<compile_context>
chip_gen: v7x
topology: tpu7x:2x2x1
jax: 0.10.0
libtpu: 0.0.40
codegen_flags: <defaults>
</compile_context>

<pallas_src>
import jax
import jax.numpy as jnp
from jax.experimental import pallas as pl
from jax.experimental.pallas import tpu as pltpu


# --------------------------------------------------------------------------- #
# Kernels
# --------------------------------------------------------------------------- #
def _downsample_kernel_fold(xre_ref, xro_ref, w_ref, b_ref, out_ref, acc_ref):
    """Small-C path: kw taps folded into matmul K.

    xre_ref: [1, 1, T+1, WO, 3C]  even padded rows of this row window,
                                  channels ordered (kw, c)
    xro_ref: [1, 1, T,   WO, 3C]  odd padded rows
    w_ref  : [3, 3C, TILE_CO]     per-kh weight slabs, K ordered (kw, c)
    b_ref  : [1, TILE_CO]
    out_ref: [1, T, WO, TILE_CO]
    acc_ref: [T*WO, TILE_CO] f32 VMEM scratch
    """
    T, WO = out_ref.shape[1], out_ref.shape[2]
    K = xre_ref.shape[-1]
    xre = xre_ref[0, 0]                       # [T+1, WO, 3C]
    xro = xro_ref[0, 0]                       # [T,   WO, 3C]
    rows = (xre[:T], xro, xre[1:T + 1])       # padded rows 2h, 2h+1, 2h+2
    for kh in range(3):
        act = rows[kh].reshape(T * WO, K)
        part = jnp.dot(act, w_ref[kh], preferred_element_type=jnp.float32)
        if kh == 0:
            acc_ref[...] = part
        else:
            acc_ref[...] += part
    res = acc_ref[...] + b_ref[...]
    out_ref[...] = res.reshape(1, T, WO, -1).astype(out_ref.dtype)


def _downsample_kernel_wide(xee_ref, xeo_ref, xoe_ref, xoo_ref,
                            w_ref, b_ref, out_ref, acc_ref):
    """Wide-C path (C >= 128): 9 K-efficient dots, no channel concat.

    xee_ref: [1, 1, T+1, WO+1, C]  even padded rows, even padded cols
    xeo_ref: [1, 1, T+1, WO,   C]  even rows, odd cols
    xoe_ref: [1, 1, T,   WO+1, C]  odd rows,  even cols
    xoo_ref: [1, 1, T,   WO,   C]  odd rows,  odd cols
    w_ref  : [9, C, TILE_CO]       taps ordered (kh, kw)
    """
    T, WO = out_ref.shape[1], out_ref.shape[2]
    C = xee_ref.shape[-1]
    xee = xee_ref[0, 0]
    xeo = xeo_ref[0, 0]
    xoe = xoe_ref[0, 0]
    xoo = xoo_ref[0, 0]
    # (even-col rows, odd-col rows) for padded rows 2h + kh, kh = 0, 1, 2.
    rows = ((xee[:T], xeo[:T]), (xoe, xoo), (xee[1:T + 1], xeo[1:T + 1]))
    first = True
    for kh in range(3):
        ev, od = rows[kh]
        taps = (ev[:, :WO, :], od, ev[:, 1:WO + 1, :])
        for kw in range(3):
            act = taps[kw].reshape(T * WO, C)
            part = jnp.dot(act, w_ref[kh * 3 + kw],
                           preferred_element_type=jnp.float32)
            if first:
                acc_ref[...] = part
                first = False
            else:
                acc_ref[...] += part
    res = acc_ref[...] + b_ref[...]
    out_ref[...] = res.reshape(1, T, WO, -1).astype(out_ref.dtype)


# --------------------------------------------------------------------------- #
# Wrapper
# --------------------------------------------------------------------------- #
def _vmem_limit_bytes():
    """~75% of physical VMEM (leaves headroom for Mosaic internal scratch)."""
    try:
        cap = getattr(pltpu.get_tpu_info(), "vmem_capacity_bytes", None)
        if cap:
            return int(cap) * 3 // 4            # 48 MiB on v7x, 96 MiB v5e/v6e
    except Exception:
        pass
    return 48 * 1024 * 1024                     # conservative default


def downsample_forward(x_nchw, weight, bias, *, use_bf16=False):
    """Conv2d(C, C, 3, stride=2, padding=1) forward.

    x_nchw : [N, C, H, W]         (PyTorch layout)
    weight : [C_out, C_in, 3, 3]  (PyTorch layout)
    bias   : [C_out]
    returns: [N, C_out, HO, WO]
    """
    N, C, H, W = x_nchw.shape
    Cout = weight.shape[0]
    KH = KW = 3
    HO = (H - 1) // 2 + 1
    WO = (W - 1) // 2 + 1

    out_dtype = x_nchw.dtype
    comp_dtype = jnp.bfloat16 if use_bf16 else x_nchw.dtype
    itemsize = jnp.dtype(comp_dtype).itemsize

    fold = C < 128                               # fold kw taps into matmul K

    # ---- output-channel tiling (lane-dense stores) --------------------------
    Cpad = ((Cout + 127) // 128) * 128
    TILE_CO = 256 if Cpad % 256 == 0 else 128
    n_ct = Cpad // TILE_CO

    # ---- row tiling: fatten MXU M dim & amortize per-step overhead ----------
    vmem_limit = _vmem_limit_bytes()
    TARGET_M = 256                               # v6e/v7x MXU is 2x256^2
    T = min(HO, max(1, -(-TARGET_M // WO)))

    def _step_vmem(t):                           # rough double-buffered budget
        act = (2 * t + 1) * (3 * C * WO if fold else C * (2 * WO + 1)) * itemsize
        wgt = KH * KW * C * TILE_CO * itemsize
        out = t * WO * TILE_CO * jnp.dtype(out_dtype).itemsize
        acc = t * WO * TILE_CO * 4
        return 2 * (act + wgt + out) + acc

    while T > 1 and _step_vmem(T) > vmem_limit // 2:
        T -= 1
    n_ht = -(-HO // T)
    HO_pad = n_ht * T

    # ---- wrapper glue (plain XLA): NCHW->NHWC, zero-pad, parity splits ------
    Hp = 2 * HO_pad + 1                          # padded rows actually read
    Wp = 2 * WO + 1                              # padded cols actually read
    x = jnp.transpose(x_nchw, (0, 2, 3, 1))                      # [N,H,W,C]
    x_pad = jnp.pad(x, ((0, 0), (1, Hp - H - 1), (1, Wp - W - 1), (0, 0)))

    # Row windows: window t covers padded rows [2*T*t, 2*T*t + 2T], split by
    # row parity so in-kernel tap slices are contiguous (no strided access).
    re_idx = 2 * T * jnp.arange(n_ht)[:, None] + 2 * jnp.arange(T + 1)[None, :]
    ro_idx = 2 * T * jnp.arange(n_ht)[:, None] + 2 * jnp.arange(T)[None, :] + 1

    if fold:
        # Column im2col only (3x, not 9x): channel order (kw, c).
        x_cols = jnp.concatenate(
            [x_pad[:, :, kw:kw + 2 * WO - 1:2, :] for kw in range(KW)],
            axis=-1).astype(comp_dtype)                          # [N,Hp,WO,3C]
        acts = (x_cols[:, re_idx], x_cols[:, ro_idx])
        # weight (Cout,Cin,KH,KW) -> [KH, KW*C, Cout], K ordered (kw, c)
        w = jnp.transpose(weight, (2, 3, 1, 0)).reshape(KH, KW * C, Cout)
        kernel = _downsample_kernel_fold
        act_specs = [
            pl.BlockSpec((1, 1, T + 1, WO, KW * C),
                         lambda j, n, t: (n, t, 0, 0, 0)),
            pl.BlockSpec((1, 1, T, WO, KW * C),
                         lambda j, n, t: (n, t, 0, 0, 0)),
        ]
        w_spec = pl.BlockSpec((KH, KW * C, TILE_CO), lambda j, n, t: (0, 0, j))
    else:
        x_even = x_pad[:, :, 0::2, :].astype(comp_dtype)         # [N,Hp,WO+1,C]
        x_odd = x_pad[:, :, 1::2, :].astype(comp_dtype)          # [N,Hp,WO,  C]
        acts = (x_even[:, re_idx], x_odd[:, re_idx],             # even rows
                x_even[:, ro_idx], x_odd[:, ro_idx])             # odd rows
        w = jnp.transpose(weight, (2, 3, 1, 0)).reshape(KH * KW, C, Cout)
        kernel = _downsample_kernel_wide
        act_specs = [
            pl.BlockSpec((1, 1, T + 1, WO + 1, C), lambda j, n, t: (n, t, 0, 0, 0)),
            pl.BlockSpec((1, 1, T + 1, WO, C), lambda j, n, t: (n, t, 0, 0, 0)),
            pl.BlockSpec((1, 1, T, WO + 1, C), lambda j, n, t: (n, t, 0, 0, 0)),
            pl.BlockSpec((1, 1, T, WO, C), lambda j, n, t: (n, t, 0, 0, 0)),
        ]
        w_spec = pl.BlockSpec((KH * KW, C, TILE_CO), lambda j, n, t: (0, 0, j))

    w = jnp.pad(w, ((0, 0), (0, 0), (0, Cpad - Cout))).astype(comp_dtype)
    b = jnp.pad(bias, (0, Cpad - Cout)).reshape(1, Cpad).astype(jnp.float32)

    flops = 2 * N * HO_pad * WO * KH * KW * C * Cpad
    bytes_accessed = (n_ct * sum(int(a.size) for a in acts) * itemsize
                      + n_ct * int(w.size) * itemsize
                      + N * HO_pad * WO * Cpad * jnp.dtype(out_dtype).itemsize)

    # NOTE: if profiling shows exposed DMA at very small WO*C, add
    # pipeline_mode=pl.Buffered(3) to the activation BlockSpecs above.
    out_padded = pl.pallas_call(
        kernel,
        out_shape=jax.ShapeDtypeStruct((N, HO_pad, WO, Cpad), out_dtype),
        grid=(n_ct, N, n_ht),                    # cout-tile outermost: weights
        in_specs=act_specs + [                   # stay VMEM-resident over N, t
            w_spec,
            pl.BlockSpec((1, TILE_CO), lambda j, n, t: (0, j)),
        ],
        out_specs=pl.BlockSpec((1, T, WO, TILE_CO),
                               lambda j, n, t: (n, t, 0, j)),
        scratch_shapes=[pltpu.VMEM((T * WO, TILE_CO), jnp.float32)],
        compiler_params=pltpu.CompilerParams(
            dimension_semantics=("parallel", "parallel", "parallel"),
            vmem_limit_bytes=vmem_limit),
        cost_estimate=pl.CostEstimate(
            flops=flops, transcendentals=0, bytes_accessed=bytes_accessed),
    )(*acts, w, b)

    out = out_padded[:, :HO, :, :Cout]           # drop row / lane padding
    return jnp.transpose(out, (0, 3, 1, 2))      # back to NCHW


if __name__ == "__main__":
    key = jax.random.PRNGKey(0)
    k_x, k_w, k_b = jax.random.split(key, 3)

    N, C, H, W = 2, 4, 16, 16
    x = jax.random.normal(k_x, (N, C, H, W), dtype=jnp.float32)

    # Deterministic parameter init (mimicking PyTorch uniform(-1/sqrt(fan_in), .))
    fan_in = C * 3 * 3
    bound = 1.0 / (fan_in ** 0.5)
    weight = jax.random.uniform(k_w, (C, C, 3, 3), minval=-bound, maxval=bound,
                                dtype=jnp.float32)
    bias = jax.random.uniform(k_b, (C,), minval=-bound, maxval=bound,
                              dtype=jnp.float32)

    fwd = jax.jit(downsample_forward, static_argnames=("use_bf16",))

    out = jax.block_until_ready(fwd(x, weight, bias, use_bf16=False))

    # Reference: XLA conv with nn.Conv2d semantics (NCHW).
    ref = jax.lax.conv_general_dilated(
        x, weight, window_strides=(2, 2), padding=((1, 1), (1, 1)),
        dimension_numbers=("NCHW", "OIHW", "NCHW"),
    ) + bias.reshape(1, C, 1, 1)
    assert out.shape == (N, C, 8, 8)
    assert jnp.allclose(out, ref, atol=1e-5, rtol=1e-5)

    # bf16-operand path (recommended default on v6e/v7x); looser tolerance.
    out_bf16 = jax.block_until_ready(fwd(x, weight, bias, use_bf16=True))
    assert jnp.allclose(out_bf16, ref, atol=5e-2, rtol=5e-2)

    print("KERNEL_OK")
</pallas_src>

<mosaic_0001>
module attributes {stable_mosaic.version = 11 : i64} {
  func.func @_downsample_kernel_fold(%arg0: i32, %arg1: i32, %arg2: i32, %arg3: memref<1x1x9x8x12xf32, #tpu.memory_space<vmem>>, %arg4: memref<1x1x8x8x12xf32, #tpu.memory_space<vmem>>, %arg5: memref<3x12x128xf32, #tpu.memory_space<vmem>>, %arg6: memref<1x128xf32, #tpu.memory_space<vmem>>, %arg7: memref<1x8x8x128xf32, #tpu.memory_space<vmem>>, %arg8: memref<64x128xf32, #tpu.memory_space<vmem>>) attributes {dimension_semantics = [#tpu.dimension_semantics<parallel>, #tpu.dimension_semantics<parallel>, #tpu.dimension_semantics<parallel>], iteration_bounds = array<i64: 1, 2, 1>, scalar_prefetch = 0 : i64, scratch_operands = 1 : i64, tpu.core_type = #tpu.core_type<tc>, window_params = [{transform_indices = @transform_0, window_bounds = array<i64: 1, 1, 9, 8, 12>}, {transform_indices = @transform_1, window_bounds = array<i64: 1, 1, 8, 8, 12>}, {transform_indices = @transform_2, window_bounds = array<i64: 3, 12, 128>}, {transform_indices = @transform_3, window_bounds = array<i64: 1, 128>}, {transform_indices = @transform_4, window_bounds = array<i64: 1, 8, 8, 128>}]} {
    %c0 = arith.constant 0 : index
    %c0_0 = arith.constant 0 : index
    %c0_1 = arith.constant 0 : index
    %c0_2 = arith.constant 0 : index
    %c0_3 = arith.constant 0 : index
    %0 = vector.load %arg3[%c0, %c0_0, %c0_1, %c0_2, %c0_3] : memref<1x1x9x8x12xf32, #tpu.memory_space<vmem>>, vector<1x1x9x8x12xf32>
    %1 = vector.shape_cast %0 : vector<1x1x9x8x12xf32> to vector<9x8x12xf32>
    %c0_4 = arith.constant 0 : index
    %c0_5 = arith.constant 0 : index
    %c0_6 = arith.constant 0 : index
    %c0_7 = arith.constant 0 : index
    %c0_8 = arith.constant 0 : index
    %2 = vector.load %arg4[%c0_4, %c0_5, %c0_6, %c0_7, %c0_8] : memref<1x1x8x8x12xf32, #tpu.memory_space<vmem>>, vector<1x1x8x8x12xf32>
    %3 = vector.shape_cast %2 : vector<1x1x8x8x12xf32> to vector<8x8x12xf32>
    %4 = vector.extract_strided_slice %1 {offsets = [0, 0, 0], sizes = [8, 8, 12], strides = [1, 1, 1]} : vector<9x8x12xf32> to vector<8x8x12xf32>
    %5 = vector.extract_strided_slice %1 {offsets = [1, 0, 0], sizes = [8, 8, 12], strides = [1, 1, 1]} : vector<9x8x12xf32> to vector<8x8x12xf32>
    %6 = vector.shape_cast %4 : vector<8x8x12xf32> to vector<64x12xf32>
    %c0_9 = arith.constant 0 : index
    %c0_10 = arith.constant 0 : index
    %c0_11 = arith.constant 0 : index
    %7 = vector.load %arg5[%c0_9, %c0_10, %c0_11] : memref<3x12x128xf32, #tpu.memory_space<vmem>>, vector<1x12x128xf32>
    %8 = vector.shape_cast %7 : vector<1x12x128xf32> to vector<12x128xf32>
    %cst = arith.constant dense<0.000000e+00> : vector<64x128xf32>
    %9 = tpu.matmul %6, %8, %cst {dimension_numbers = #tpu.dot_dimension_numbers<[1], [0], [0], [1], [0, 0, 1, 1], [], []>} : vector<64x12xf32>, vector<12x128xf32>, vector<64x128xf32> -> vector<64x128xf32>
    %c0_12 = arith.constant 0 : index
    %c0_13 = arith.constant 0 : index
    %10 = vector.load %arg8[%c0_12, %c0_13] : memref<64x128xf32, #tpu.memory_space<vmem>>, vector<64x128xf32>
    tpu.vector_store %arg8[%c0_12, %c0_13], %9 {strides = array<i32>} : memref<64x128xf32, #tpu.memory_space<vmem>>, vector<64x128xf32>,
    %11 = vector.shape_cast %3 : vector<8x8x12xf32> to vector<64x12xf32>
    %c1 = arith.constant 1 : index
    %c0_14 = arith.constant 0 : index
    %c0_15 = arith.constant 0 : index
    %12 = vector.load %arg5[%c1, %c0_14, %c0_15] : memref<3x12x128xf32, #tpu.memory_space<vmem>>, vector<1x12x128xf32>
    %13 = vector.shape_cast %12 : vector<1x12x128xf32> to vector<12x128xf32>
    %cst_16 = arith.constant dense<0.000000e+00> : vector<64x128xf32>
    %14 = tpu.matmul %11, %13, %cst_16 {dimension_numbers = #tpu.dot_dimension_numbers<[1], [0], [0], [1], [0, 0, 1, 1], [], []>} : vector<64x12xf32>, vector<12x128xf32>, vector<64x128xf32> -> vector<64x128xf32>
    %c0_17 = arith.constant 0 : index
    %c0_18 = arith.constant 0 : index
    %15 = vector.load %arg8[%c0_17, %c0_18] : memref<64x128xf32, #tpu.memory_space<vmem>>, vector<64x128xf32>
    %16 = arith.addf %15, %14 : vector<64x128xf32>
    %c0_19 = arith.constant 0 : index
    %c0_20 = arith.constant 0 : index
    %17 = vector.load %arg8[%c0_19, %c0_20] : memref<64x128xf32, #tpu.memory_space<vmem>>, vector<64x128xf32>
    tpu.vector_store %arg8[%c0_19, %c0_20], %16 {strides = array<i32>} : memref<64x128xf32, #tpu.memory_space<vmem>>, vector<64x128xf32>,
    %18 = vector.shape_cast %5 : vector<8x8x12xf32> to vector<64x12xf32>
    %c2 = arith.constant 2 : index
    %c0_21 = arith.constant 0 : index
    %c0_22 = arith.constant 0 : index
    %19 = vector.load %arg5[%c2, %c0_21, %c0_22] : memref<3x12x128xf32, #tpu.memory_space<vmem>>, vector<1x12x128xf32>
    %20 = vector.shape_cast %19 : vector<1x12x128xf32> to vector<12x128xf32>
    %cst_23 = arith.constant dense<0.000000e+00> : vector<64x128xf32>
    %21 = tpu.matmul %18, %20, %cst_23 {dimension_numbers = #tpu.dot_dimension_numbers<[1], [0], [0], [1], [0, 0, 1, 1], [], []>} : vector<64x12xf32>, vector<12x128xf32>, vector<64x128xf32> -> vector<64x128xf32>
    %c0_24 = arith.constant 0 : index
    %c0_25 = arith.constant 0 : index
    %22 = vector.load %arg8[%c0_24, %c0_25] : memref<64x128xf32, #tpu.memory_space<vmem>>, vector<64x128xf32>
    %23 = arith.addf %22, %21 : vector<64x128xf32>
    %c0_26 = arith.constant 0 : index
    %c0_27 = arith.constant 0 : index
    %24 = vector.load %arg8[%c0_26, %c0_27] : memref<64x128xf32, #tpu.memory_space<vmem>>, vector<64x128xf32>
    tpu.vector_store %arg8[%c0_26, %c0_27], %23 {strides = array<i32>} : memref<64x128xf32, #tpu.memory_space<vmem>>, vector<64x128xf32>,
    %c0_28 = arith.constant 0 : index
    %c0_29 = arith.constant 0 : index
    %25 = vector.load %arg8[%c0_28, %c0_29] : memref<64x128xf32, #tpu.memory_space<vmem>>, vector<64x128xf32>
    %c0_30 = arith.constant 0 : index
    %c0_31 = arith.constant 0 : index
    %26 = vector.load %arg6[%c0_30, %c0_31] : memref<1x128xf32, #tpu.memory_space<vmem>>, vector<1x128xf32>
    %27 = vector.broadcast %26 : vector<1x128xf32> to vector<64x128xf32>
    %28 = arith.addf %25, %27 : vector<64x128xf32>
    %29 = vector.shape_cast %28 : vector<64x128xf32> to vector<1x8x8x128xf32>
    %c0_32 = arith.constant 0 : index
    %c0_33 = arith.constant 0 : index
    %c0_34 = arith.constant 0 : index
    %c0_35 = arith.constant 0 : index
    %30 = vector.load %arg7[%c0_32, %c0_33, %c0_34, %c0_35] : memref<1x8x8x128xf32, #tpu.memory_space<vmem>>, vector<1x8x8x128xf32>
    tpu.vector_store %arg7[%c0_32, %c0_33, %c0_34, %c0_35], %29 {strides = array<i32>} : memref<1x8x8x128xf32, #tpu.memory_space<vmem>>, vector<1x8x8x128xf32>,
    return
  }
  func.func @transform_0(%arg0: i32, %arg1: i32, %arg2: i32) -> (i32, i32, i32, i32, i32) {
    %c0_i32 = arith.constant 0 : i32
    %c0_i32_0 = arith.constant 0 : i32
    %c0_i32_1 = arith.constant 0 : i32
    %c0_i32_2 = arith.constant 0 : i32
    return %arg1, %arg2, %c0_i32, %c0_i32_0, %c0_i32_1 : i32, i32, i32, i32, i32
  }
  func.func @transform_1(%arg0: i32, %arg1: i32, %arg2: i32) -> (i32, i32, i32, i32, i32) {
    %c0_i32 = arith.constant 0 : i32
    %c0_i32_0 = arith.constant 0 : i32
    %c0_i32_1 = arith.constant 0 : i32
    %c0_i32_2 = arith.constant 0 : i32
    return %arg1, %arg2, %c0_i32, %c0_i32_0, %c0_i32_1 : i32, i32, i32, i32, i32
  }
  func.func @transform_2(%arg0: i32, %arg1: i32, %arg2: i32) -> (i32, i32, i32) {
    %c0_i32 = arith.constant 0 : i32
    %c0_i32_0 = arith.constant 0 : i32
    %c0_i32_1 = arith.constant 0 : i32
    return %c0_i32, %c0_i32_0, %arg0 : i32, i32, i32
  }
  func.func @transform_3(%arg0: i32, %arg1: i32, %arg2: i32) -> (i32, i32) {
    %c0_i32 = arith.constant 0 : i32
    %c0_i32_0 = arith.constant 0 : i32
    return %c0_i32, %arg0 : i32, i32
  }
  func.func @transform_4(%arg0: i32, %arg1: i32, %arg2: i32) -> (i32, i32, i32, i32) {
    %c0_i32 = arith.constant 0 : i32
    %c0_i32_0 = arith.constant 0 : i32
    return %arg1, %arg2, %c0_i32, %arg0 : i32, i32, i32, i32
  }
}

</mosaic_0001>

<llo_original>
// kernel: downsample_forward.1
$region0: #{downsample_forward.1}
  #allocation0 [shape = 'u32[]', space=smem, size = 0x4, offset = 0x4, fixed_abs, tag = 'smem constant byte address 0x4 - core index']
  #allocation1 [shape = 'u32[144,128]{1,0:T(1,128)}', space=vmem, size = 0x12000, scoped, tag = 'internal scratch']
  #allocation2 [shape = 'f32[64,128]{1,0:T(8,128)}', space=vmem, size = 0x8000, scoped, tag = 'scratch operand']
  %s0 = inlined_call_operand.vmem [shape: f32[2,1,9,8,12], index: 0, kind: input, shape index: {}]
  %s1 = inlined_call_operand.vmem [shape: f32[2,1,8,8,12], index: 1, kind: input, shape index: {}]
  %s2 = inlined_call_operand.vmem [shape: f32[3,12,128], index: 2, kind: input, shape index: {}]
  %s3 = inlined_call_operand.vmem [shape: f32[1,128], index: 3, kind: input, shape index: {}]
  %s4 = inlined_call_operand.vmem [shape: f32[2,8,8,128], index: 4, kind: output, shape index: {}]
  %s5 = sld [smem:[#allocation0]]
  $region49: #{downsample_forward.1} parent=0
    _
  %s7 = ssub.s32 1, %s5
  %s8 = scalar_select 0, %s7, %s5
  loop: start=0, step=1, limit=4
  $region2: #{downsample_forward.1} parent=0 // loop_pre_header
    _
  $region3: #{downsample_forward.1} parent=0 // loop_header
    %s10 = sphi 0, %s14
    %p11 = scmp.ge.s32.totalorder %s10, 4
    %s17 = sphi 0, %s36
    %s18 = sphi 0, %s32
    %s19 = sphi 0, %s28
    %s20 = sphi 0, %s17
    %s21 = sphi 0, %s18
    %s22 = sphi 0, %s19
    %s23 = sphi 0, %s20
    %s24 = sphi 0, %s21
    %s25 = sphi 0, %s22
    %s41 = sphi 0, %s43
    %s44 = sphi 0, %s41
    %s45 = sphi 0, %s44
    %s61 = sphi 0, %s45
    %s69 = sphi 0, %s71
    %s72 = sphi 0, %s69
    %s73 = sphi 0, %s72
    %s89 = sphi 0, %s73
    %s95 = sphi 0, %s97
    %s98 = sphi 0, %s95
    %s99 = sphi 0, %s98
    %s115 = sphi 0, %s99
    %s121 = sphi 0, %s123
    %s124 = sphi 0, %s121
    %s125 = sphi 0, %s124
    %s141 = sphi 0, %s125
    %s151 = sphi 0, %s153
    %s154 = sphi 0, %s151
    %s155 = sphi 0, %s154
    %s171 = sphi 0, %s155
  $region4: #{downsample_forward.1} parent=0 // loop_header_branch
    %13 = sbr.rel (%p11) target = $region8
  $region5: #{downsample_forward.1} parent=0 // loop_body
    %s15 = ssub.s32 %s10, 1
    %s16 = ssub.s32 %s10, 2
    %s26 = sadd.s32 1, %s19
    %p27 = scmp.ge.s32.totalorder %s26, 1
    %s28 = scalar_select %p27, 0, %s26
    %s29 = sadd.s32 1, %s18
    %s30 = scalar_select %p27, %s29, %s18
    %p31 = scmp.ge.s32.totalorder %s30, 2
    %s32 = scalar_select %p31, 0, %s30
    %s33 = sadd.s32 1, %s17
    %s34 = scalar_select %p31, %s33, %s17
    %p35 = scmp.ge.s32.totalorder %s34, 1
    %s36 = scalar_select %p35, 0, %s34
    %s37 = ssub.s32 %s18, %s32
    %s38 = ssub.s32 %s19, %s28
    %s39 = sor.u32 %s37, %s38
    %p40 = scmp.eq.s32.totalorder %s39, 0
    %s42 = sadd.s32 %s41, 1
    %s43 = scalar_select %p40, %s41, %s42
    %p46 = pneg %p40
    %p47 = scmp.eq.s32.totalorder %s10, 1
    %p48 = por %p46, %p47
    %p49 = scmp.ne.s32.totalorder %s41, %s44
    %p50 = scmp.eq.s32.totalorder %s10, 0
    %p51 = por %p49, %p50
    %p52 = scmp.ne.s32.totalorder %s41, %s44
    %p53 = scmp.eq.s32.totalorder %s15, 1
    %p54 = por %p52, %p53
    %p55 = scmp.ne.s32.totalorder %s44, %s45
    %p56 = scmp.eq.s32.totalorder %s15, 0
    %p57 = por %p55, %p56
    %p58 = scmp.ne.s32.totalorder %s44, %s45
    %p59 = scmp.eq.s32.totalorder %s16, 1
    %p60 = por %p58, %p59
    %p62 = scmp.ne.s32.totalorder %s45, %s61
    %p63 = scmp.eq.s32.totalorder %s16, 0
    %p64 = por %p62, %p63
    %s65 = ssub.s32 %s18, %s32
    %s66 = ssub.s32 %s19, %s28
    %s67 = sor.u32 %s65, %s66
    %p68 = scmp.eq.s32.totalorder %s67, 0
    %s70 = sadd.s32 %s69, 1
    %s71 = scalar_select %p68, %s69, %s70
    %p74 = pneg %p68
    %p75 = scmp.eq.s32.totalorder %s10, 1
    %p76 = por %p74, %p75
    %p77 = scmp.ne.s32.totalorder %s69, %s72
    %p78 = scmp.eq.s32.totalorder %s10, 0
    %p79 = por %p77, %p78
    %p80 = scmp.ne.s32.totalorder %s69, %s72
    %p81 = scmp.eq.s32.totalorder %s15, 1
    %p82 = por %p80, %p81
    %p83 = scmp.ne.s32.totalorder %s72, %s73
    %p84 = scmp.eq.s32.totalorder %s15, 0
    %p85 = por %p83, %p84
    %p86 = scmp.ne.s32.totalorder %s72, %s73
    %p87 = scmp.eq.s32.totalorder %s16, 1
    %p88 = por %p86, %p87
    %p90 = scmp.ne.s32.totalorder %s73, %s89
    %p91 = scmp.eq.s32.totalorder %s16, 0
    %p92 = por %p90, %p91
    %s93 = ssub.s32 %s17, %s36
    %p94 = scmp.eq.s32.totalorder %s93, 0
    %s96 = sadd.s32 %s95, 1
    %s97 = scalar_select %p94, %s95, %s96
    %p100 = pneg %p94
    %p101 = scmp.eq.s32.totalorder %s10, 1
    %p102 = por %p100, %p101
    %p103 = scmp.ne.s32.totalorder %s95, %s98
    %p104 = scmp.eq.s32.totalorder %s10, 0
    %p105 = por %p103, %p104
    %p106 = scmp.ne.s32.totalorder %s95, %s98
    %p107 = scmp.eq.s32.totalorder %s15, 1
    %p108 = por %p106, %p107
    %p109 = scmp.ne.s32.totalorder %s98, %s99
    %p110 = scmp.eq.s32.totalorder %s15, 0
    %p111 = por %p109, %p110
    %p112 = scmp.ne.s32.totalorder %s98, %s99
    %p113 = scmp.eq.s32.totalorder %s16, 1
    %p114 = por %p112, %p113
    %p116 = scmp.ne.s32.totalorder %s99, %s115
    %p117 = scmp.eq.s32.totalorder %s16, 0
    %p118 = por %p116, %p117
    %s119 = ssub.s32 %s17, %s36
    %p120 = scmp.eq.s32.totalorder %s119, 0
    %s122 = sadd.s32 %s121, 1
    %s123 = scalar_select %p120, %s121, %s122
    %p126 = pneg %p120
    %p127 = scmp.eq.s32.totalorder %s10, 1
    %p128 = por %p126, %p127
    %p129 = scmp.ne.s32.totalorder %s121, %s124
    %p130 = scmp.eq.s32.totalorder %s10, 0
    %p131 = por %p129, %p130
    %p132 = scmp.ne.s32.totalorder %s121, %s124
    %p133 = scmp.eq.s32.totalorder %s15, 1
    %p134 = por %p132, %p133
    %p135 = scmp.ne.s32.totalorder %s124, %s125
    %p136 = scmp.eq.s32.totalorder %s15, 0
    %p137 = por %p135, %p136
    %p138 = scmp.ne.s32.totalorder %s124, %s125
    %p139 = scmp.eq.s32.totalorder %s16, 1
    %p140 = por %p138, %p139
    %p142 = scmp.ne.s32.totalorder %s125, %s141
    %p143 = scmp.eq.s32.totalorder %s16, 0
    %p144 = por %p142, %p143
    %s145 = ssub.s32 %s18, %s32
    %s146 = ssub.s32 %s19, %s28
    %s147 = sor.u32 %s145, %s146
    %s148 = ssub.s32 %s17, %s36
    %s149 = sor.u32 %s147, %s148
    %p150 = scmp.eq.s32.totalorder %s149, 0
    %s152 = sadd.s32 %s151, 1
    %s153 = scalar_select %p150, %s151, %s152
    %p156 = pneg %p150
    %p157 = scmp.eq.s32.totalorder %s10, 1
    %p158 = por %p156, %p157
    %p159 = scmp.ne.s32.totalorder %s151, %s154
    %p160 = scmp.eq.s32.totalorder %s10, 0
    %p161 = por %p159, %p160
    %p162 = scmp.ne.s32.totalorder %s151, %s154
    %p163 = scmp.eq.s32.totalorder %s15, 1
    %p164 = por %p162, %p163
    %p165 = scmp.ne.s32.totalorder %s154, %s155
    %p166 = scmp.eq.s32.totalorder %s15, 0
    %p167 = por %p165, %p166
    %p168 = scmp.ne.s32.totalorder %s154, %s155
    %p169 = scmp.eq.s32.totalorder %s16, 1
    %p170 = por %p168, %p169
    %p172 = scmp.ne.s32.totalorder %s155, %s171
    %p173 = scmp.eq.s32.totalorder %s16, 0
    %p174 = por %p172, %p173
    %p175 = scmp.le.s32.totalorder 1, %s10
    %p176 = scmp.lt.s32.totalorder %s10, 3
    %p177 = pnand %p175, %p176
    %p178 = pneg %p177
    // Predicated region
    $region9: #{downsample_forward.1} parent=5 // pred_check
      _
    $region10: #{downsample_forward.1} parent=5 // pred_check_branch
      %180 = sbr.rel (%p177) target = $region12
    $region11: #{downsample_forward.1} parent=5 // pred_region
      %s181 = ssub.s32 %s10, 1
      // Predicated region
      $region13: #{downsample_forward.1} parent=11 // pred_check
        %p182 = pneg %p111
      $region14: #{downsample_forward.1} parent=11 // pred_check_branch
        %184 = sbr.rel (%p182) target = $region16
      $region15: #{downsample_forward.1} parent=11 // pred_region
        %p185 = scmp.lt.s32.totalorder %s20, 0
        %s186 = scalar_select %p185, %s20, 0
        %s187 = smul.addr %s186, 8
        %s188 = scalar_lea.vmem %s2, %s187
      $region16: #{downsample_forward.1} parent=11 // pred_fallthru
        _
      // Predicated region
      $region17: #{downsample_forward.1} parent=11 // pred_check
        %p189 = pneg %p137
      $region18: #{downsample_forward.1} parent=11 // pred_check_branch
        %191 = sbr.rel (%p189) target = $region20
      $region19: #{downsample_forward.1} parent=11 // pred_region
        %p192 = scmp.lt.s32.totalorder %s20, 0
        %s193 = scalar_select %p192, %s20, 0
        %s194 = scalar_lea.vmem %s3, %s193
      $region20: #{downsample_forward.1} parent=11 // pred_fallthru
        _
    $region12: #{downsample_forward.1} parent=5 // pred_fallthru
      _
    %p195 = scmp.lt.s32.totalorder %s10, 2
    // Predicated region
    $region21: #{downsample_forward.1} parent=5 // pred_check
      %p196 = pneg %p195
    $region22: #{downsample_forward.1} parent=5 // pred_check_branch
      %198 = sbr.rel (%p196) target = $region24
    $region23: #{downsample_forward.1} parent=5 // pred_region
      // Predicated region
      $region25: #{downsample_forward.1} parent=23 // pred_check
        %p199 = pneg %p51
      $region26: #{downsample_forward.1} parent=23 // pred_check_branch
        %201 = sbr.rel (%p199) target = $region28
      $region27: #{downsample_forward.1} parent=23 // pred_region
        %p202 = scmp.lt.s32.totalorder %s18, 1
        %s203 = scalar_select %p202, %s18, 1
        %p204 = scmp.lt.s32.totalorder %s19, 0
        %s205 = scalar_select %p204, %s19, 0
        %s206 = smul.addr %s205, 9
        %s207 = smul.addr %s203, 9
        %s208 = sadd.s32 %s206, %s207
        %s209 = smul.addr %s208, 8
        %s210 = scalar_lea.vmem %s0, %s209
      $region28: #{downsample_forward.1} parent=23 // pred_fallthru
        _
      // Predicated region
      $region29: #{downsample_forward.1} parent=23 // pred_check
        %p211 = pneg %p79
      $region30: #{downsample_forward.1} parent=23 // pred_check_branch
        %213 = sbr.rel (%p211) target = $region32
      $region31: #{downsample_forward.1} parent=23 // pred_region
        %p214 = scmp.lt.s32.totalorder %s18, 1
        %s215 = scalar_select %p214, %s18, 1
        %p216 = scmp.lt.s32.totalorder %s19, 0
        %s217 = scalar_select %p216, %s19, 0
        %s218 = smul.addr %s217, 8
        %s219 = smul.addr %s215, 8
        %s220 = sadd.s32 %s218, %s219
        %s221 = smul.addr %s220, 8
        %s222 = scalar_lea.vmem %s1, %s221
      $region32: #{downsample_forward.1} parent=23 // pred_fallthru
        _
    $region24: #{downsample_forward.1} parent=5 // pred_fallthru
      _
    %p223 = scmp.le.s32.totalorder 1, %s10
    %p224 = scmp.lt.s32.totalorder %s10, 3
    %p225 = pnand %p223, %p224
    %p226 = pneg %p225
    // Predicated region
    $region33: #{downsample_forward.1} parent=5 // pred_check
      _
    $region34: #{downsample_forward.1} parent=5 // pred_check_branch
      %228 = sbr.rel (%p225) target = $region36
    $region35: #{downsample_forward.1} parent=5 // pred_region
      %s229 = ssub.s32 %s10, 1
      %p230 = scmp.lt.s32.totalorder %s21, 1
      %s231 = scalar_select %p230, %s21, 1
      %p232 = scmp.lt.s32.totalorder %s22, 0
      %s233 = scalar_select %p232, %s22, 0
      %s234 = smul.addr %s233, 9
      %s235 = smul.addr %s231, 9
      %s236 = sadd.s32 %s234, %s235
      %s237 = smul.addr %s236, 8
      %s238 = scalar_lea.vmem %s0, %s237
      %p239 = pneg %p57
      %p240 = pneg %p54
      %p241 = scmp.lt.s32.totalorder %s21, 1
      %s242 = scalar_select %p241, %s21, 1
      %p243 = scmp.lt.s32.totalorder %s22, 0
      %s244 = scalar_select %p243, %s22, 0
      %s245 = smul.addr %s244, 8
      %s246 = smul.addr %s242, 8
      %s247 = sadd.s32 %s245, %s246
      %s248 = smul.addr %s247, 8
      %s249 = scalar_lea.vmem %s1, %s248
      %p250 = pneg %p85
      %p251 = pneg %p82
      %p252 = scmp.lt.s32.totalorder %s20, 0
      %s253 = scalar_select %p252, %s20, 0
      %s254 = smul.addr %s253, 8
      %s255 = scalar_lea.vmem %s2, %s254
      %p256 = pneg %p111
      %p257 = pneg %p108
      %p258 = scmp.lt.s32.totalorder %s20, 0
      %s259 = scalar_select %p258, %s20, 0
      %s260 = scalar_lea.vmem %s3, %s259
      %p261 = pneg %p137
      %p262 = pneg %p134
      %p263 = pneg %p167
      %p264 = pneg %p164
      %s265 = smul.u32 8, %s22
      %p266 = scmp.lt.s32.totalorder %s21, 1
      %s267 = scalar_select %p266, %s21, 1
      %p268 = scmp.lt.s32.totalorder %s265, 7
      %s269 = scalar_select %p268, %s265, 7
      %p270 = scmp.lt.s32.totalorder %s20, 0
      %s271 = scalar_select %p270, %s20, 0
      %s272 = sadd.s32 %s271, %s269
      %s273 = smul.addr %s267, 8
      %s274 = sadd.s32 %s272, %s273
      %s275 = smul.addr %s274, 8
      %s276 = scalar_lea.vmem %s4, %s275
      %p277 = scmp.lt.s32.totalorder %s21, 1
      %s278 = scalar_select %p277, %s21, 1
      %p279 = scmp.lt.s32.totalorder %s22, 0
      %s280 = scalar_select %p279, %s22, 0
      %s281 = smul.addr %s280, 9
      %s282 = smul.addr %s278, 9
      %s283 = sadd.s32 %s281, %s282
      %s284 = smul.addr %s283, 8
      %s285 = scalar_lea.vmem %s0, %s284
      %p286 = scmp.lt.s32.totalorder %s21, 1
      %s287 = scalar_select %p286, %s21, 1
      %p288 = scmp.lt.s32.totalorder %s22, 0
      %s289 = scalar_select %p288, %s22, 0
      %s290 = smul.addr %s289, 8
      %s291 = smul.addr %s287, 8
      %s292 = sadd.s32 %s290, %s291
      %s293 = smul.addr %s292, 8
      %s294 = scalar_lea.vmem %s1, %s293
      %p295 = scmp.lt.s32.totalorder %s20, 0
      %s296 = scalar_select %p295, %s20, 0
      %s297 = smul.addr %s296, 8
      %s298 = scalar_lea.vmem %s2, %s297
      %p299 = scmp.lt.s32.totalorder %s20, 0
      %s300 = scalar_select %p299, %s20, 0
      %s301 = scalar_lea.vmem %s3, %s300
      %s302 = smul.u32 8, %s22
      %p303 = scmp.lt.s32.totalorder %s21, 1
      %s304 = scalar_select %p303, %s21, 1
      %p305 = scmp.lt.s32.totalorder %s302, 7
      %s306 = scalar_select %p305, %s302, 7
      %p307 = scmp.lt.s32.totalorder %s20, 0
      %s308 = scalar_select %p307, %s20, 0
      %s309 = sadd.s32 %s308, %s306
      %s310 = smul.addr %s304, 8
      %s311 = sadd.s32 %s309, %s310
      %s312 = smul.addr %s311, 8
      %s313 = scalar_lea.vmem %s4, %s312
      %s314 = smul.u32 8, %s22
      %v315 = vld [vmem:[%s285] sm:$0xff]
      %v316 = vld [vmem:[%s285 + $0x8] sm:$0xff]
      %v317 = vld [vmem:[%s285 + $0x10] sm:$0xff]
      %v318 = vld [vmem:[%s285 + $0x18] sm:$0xff]
      %v319 = vld [vmem:[%s285 + $0x20] sm:$0xff]
      %v320 = vld [vmem:[%s285 + $0x28] sm:$0xff]
      %v321 = vld [vmem:[%s285 + $0x30] sm:$0xff]
      %v322 = vld [vmem:[%s285 + $0x38] sm:$0xff]
      %v323 = vld [vmem:[%s285 + $0x40] sm:$0xff]
      %v324 = vld [vmem:[%s294] sm:$0xff]
      %v325 = vld [vmem:[%s294 + $0x8] sm:$0xff]
      %v326 = vld [vmem:[%s294 + $0x10] sm:$0xff]
      %v327 = vld [vmem:[%s294 + $0x18] sm:$0xff]
      %v328 = vld [vmem:[%s294 + $0x20] sm:$0xff]
      %v329 = vld [vmem:[%s294 + $0x28] sm:$0xff]
      %v330 = vld [vmem:[%s294 + $0x30] sm:$0xff]
      %v331 = vld [vmem:[%s294 + $0x38] sm:$0xff]
      %v332 = vld [vmem:[%s298] sm:$0xff]
      %v333 = vld [vmem:[%s298 + $0x8] sm:$0xf]
      %vm334 = vcmask 97280
      %v336 = vsel %vm334, %v315, 0
      %v339 = vsel %vm334, %v316, 0
      %v342 = vsel %vm334, %v317, 0
      %v345 = vsel %vm334, %v318, 0
      %v348 = vsel %vm334, %v319, 0
      %v351 = vsel %vm334, %v320, 0
      %v354 = vsel %vm334, %v321, 0
      %v357 = vsel %vm334, %v322, 0
      %vm359 = vcmask 1043456
      %v361 = vsel %vm359, %v333, 0
      %363 = vmatprep.subr.mxu0 0.0
      %364 = vmatpush1.msra.mxu0 %v332
      %365 = vmatprep.subr.mxu0 0.0
      %366 = vmatpush1.msra.mxu0 %v361
      %367 = vmatprep.subr.mxu0 0.0
      %368 = vmatpush1.msra.mxu0 0.0
      %369 = vmatprep.subr.mxu0 0.0
      %370 = vmatpush1.msra.mxu0 0.0
      %371 = vmatprep.subr.mxu0 0.0
      %372 = vmatpush1.msra.mxu0 0.0
      %373 = vmatprep.subr.mxu0 0.0
      %374 = vmatpush1.msra.mxu0 0.0
      %375 = vmatprep.subr.mxu0 0.0
      %376 = vmatpush1.msra.mxu0 0.0
      %377 = vmatprep.subr.mxu0 0.0
      %378 = vmatpush1.msra.mxu0 0.0
      %379 = vmatprep.subr.mxu0 0.0
      %380 = vmatpush1.msra.mxu0 0.0
      %381 = vmatprep.subr.mxu0 0.0
      %382 = vmatpush1.msra.mxu0 0.0
      %383 = vmatprep.subr.mxu0 0.0
      %384 = vmatpush1.msra.mxu0 0.0
      %385 = vmatprep.subr.mxu0 0.0
      %386 = vmatpush1.msra.mxu0 0.0
      %387 = vmatprep.subr.mxu0 0.0
      %388 = vmatpush1.msra.mxu0 0.0
      %389 = vmatprep.subr.mxu0 0.0
      %390 = vmatpush1.msra.mxu0 0.0
      %391 = vmatprep.subr.mxu0 0.0
      %392 = vmatpush1.msra.mxu0 0.0
      %393 = vmatprep.subr.mxu0 0.0
      %394 = vmatpush1.msra.mxu0 0.0
      %395 = vmatprep.subr.mxu0 0.0
      %396 = vmatpush1.msra.mxu0 0.0
      %397 = vmatprep.subr.mxu0 0.0
      %398 = vmatpush1.msra.mxu0 0.0
      %399 = vmatprep.subr.mxu0 0.0
      %400 = vmatpush1.msra.mxu0 0.0
      %401 = vmatprep.subr.mxu0 0.0
      %402 = vmatpush1.msra.mxu0 0.0
      %403 = vmatprep.subr.mxu0 0.0
      %404 = vmatpush1.msra.mxu0 0.0
      %405 = vmatprep.subr.mxu0 0.0
      %406 = vmatpush1.msra.mxu0 0.0
      %407 = vmatprep.subr.mxu0 0.0
      %408 = vmatpush1.msra.mxu0 0.0
      %409 = vmatprep.subr.mxu0 0.0
      %410 = vmatpush1.msra.mxu0 0.0
      %411 = vmatprep.subr.mxu0 0.0
      %412 = vmatpush1.msra.mxu0 0.0
      %413 = vmatprep.subr.mxu0 0.0
      %414 = vmatpush1.msra.mxu0 0.0
      %415 = vmatprep.subr.mxu0 0.0
      %416 = vmatpush1.msra.mxu0 0.0
      %417 = vmatprep.subr.mxu0 0.0
      %418 = vmatpush1.msra.mxu0 0.0
      %419 = vmatprep.subr.mxu0 0.0
      %420 = vmatpush1.msra.mxu0 0.0
      %421 = vmatprep.subr.mxu0 0.0
      %422 = vmatpush1.msra.mxu0 0.0
      %423 = vmatprep.subr.mxu0 0.0
      %424 = vmatpush1.msra.mxu0 0.0
      %425 = vmatprep.subr.mxu0 0.0
      %426 = vmatpush1.msra.mxu0 0.0
      %427 = vmatprep.mubr.f32.mxu0 0.0
      %428 = vmatmul.mubr.f32.gmra.mrb[0].mxu0 %v336
      %v429 = vpop.f32.mrb[0].mxu0
      %v430 = vadd.f32 0.0, %v429
      %v431 = vpop.f32.mrb[0].mxu0
      %432 = vmatprep.mubr.f32.mxu0 0.0
      %433 = vmatmul.mubr.f32.gmra.mrb[0].mxu0 %v339
      %v434 = vpop.f32.mrb[0].mxu0
      %v435 = vadd.f32 0.0, %v434
      %v436 = vpop.f32.mrb[0].mxu0
      %437 = vmatprep.mubr.f32.mxu0 0.0
      %438 = vmatmul.mubr.f32.gmra.mrb[0].mxu0 %v342
      %v439 = vpop.f32.mrb[0].mxu0
      %v440 = vadd.f32 0.0, %v439
      %v441 = vpop.f32.mrb[0].mxu0
      %442 = vmatprep.mubr.f32.mxu0 0.0
      %443 = vmatmul.mubr.f32.gmra.mrb[0].mxu0 %v345
      %v444 = vpop.f32.mrb[0].mxu0
      %v445 = vadd.f32 0.0, %v444
      %v446 = vpop.f32.mrb[0].mxu0
      %447 = vmatprep.mubr.f32.mxu0 0.0
      %448 = vmatmul.mubr.f32.gmra.mrb[0].mxu0 %v348
      %v449 = vpop.f32.mrb[0].mxu0
      %v450 = vadd.f32 0.0, %v449
      %v451 = vpop.f32.mrb[0].mxu0
      %452 = vmatprep.mubr.f32.mxu0 0.0
      %453 = vmatmul.mubr.f32.gmra.mrb[0].mxu0 %v351
      %v454 = vpop.f32.mrb[0].mxu0
      %v455 = vadd.f32 0.0, %v454
      %v456 = vpop.f32.mrb[0].mxu0
      %457 = vmatprep.mubr.f32.mxu0 0.0
      %458 = vmatmul.mubr.f32.gmra.mrb[0].mxu0 %v354
      %v459 = vpop.f32.mrb[0].mxu0
      %v460 = vadd.f32 0.0, %v459
      %v461 = vpop.f32.mrb[0].mxu0
      %462 = vmatprep.mubr.f32.mxu0 0.0
      %463 = vmatmul.mubr.f32.gmra.mrb[0].mxu0 %v357
      %v464 = vpop.f32.mrb[0].mxu0
      %v465 = vadd.f32 0.0, %v464
      %v466 = vpop.f32.mrb[0].mxu0
      %467 = vdwg.mxu0
      %468 = vst [vmem:[#allocation2] sm:$0xff] %v430
      %469 = vst [vmem:[#allocation2 + $0x8] sm:$0xff] %v435
      %470 = vst [vmem:[#allocation2 + $0x10] sm:$0xff] %v440
      %471 = vst [vmem:[#allocation2 + $0x18] sm:$0xff] %v445
      %472 = vst [vmem:[#allocation2 + $0x20] sm:$0xff] %v450
      %473 = vst [vmem:[#allocation2 + $0x28] sm:$0xff] %v455
      %474 = vst [vmem:[#allocation2 + $0x30] sm:$0xff] %v460
      %475 = vst [vmem:[#allocation2 + $0x38] sm:$0xff] %v465
      %s476 = scalar_lea.vmem %s298, 16
      %v477 = vld [vmem:[%s476] sm:$0xff]
      %v478 = vld [vmem:[%s476 + $0x8] sm:$0xf]
      %v480 = vsel %vm334, %v324, 0
      %v483 = vsel %vm334, %v325, 0
      %v486 = vsel %vm334, %v326, 0
      %v489 = vsel %vm334, %v327, 0
      %v492 = vsel %vm334, %v328, 0
      %v495 = vsel %vm334, %v329, 0
      %v498 = vsel %vm334, %v330, 0
      %v501 = vsel %vm334, %v331, 0
      %v504 = vsel %vm359, %v478, 0
      %506 = vmatprep.subr.mxu0 0.0
      %507 = vmatpush1.msra.mxu0 %v477
      %508 = vmatprep.subr.mxu0 0.0
      %509 = vmatpush1.msra.mxu0 %v504
      %510 = vmatprep.subr.mxu0 0.0
      %511 = vmatpush1.msra.mxu0 0.0
      %512 = vmatprep.subr.mxu0 0.0
      %513 = vmatpush1.msra.mxu0 0.0
      %514 = vmatprep.subr.mxu0 0.0
      %515 = vmatpush1.msra.mxu0 0.0
      %516 = vmatprep.subr.mxu0 0.0
      %517 = vmatpush1.msra.mxu0 0.0
      %518 = vmatprep.subr.mxu0 0.0
      %519 = vmatpush1.msra.mxu0 0.0
      %520 = vmatprep.subr.mxu0 0.0
      %521 = vmatpush1.msra.mxu0 0.0
      %522 = vmatprep.subr.mxu0 0.0
      %523 = vmatpush1.msra.mxu0 0.0
      %524 = vmatprep.subr.mxu0 0.0
      %525 = vmatpush1.msra.mxu0 0.0
      %526 = vmatprep.subr.mxu0 0.0
      %527 = vmatpush1.msra.mxu0 0.0
      %528 = vmatprep.subr.mxu0 0.0
      %529 = vmatpush1.msra.mxu0 0.0
      %530 = vmatprep.subr.mxu0 0.0
      %531 = vmatpush1.msra.mxu0 0.0
      %532 = vmatprep.subr.mxu0 0.0
      %533 = vmatpush1.msra.mxu0 0.0
      %534 = vmatprep.subr.mxu0 0.0
      %535 = vmatpush1.msra.mxu0 0.0
      %536 = vmatprep.subr.mxu0 0.0
      %537 = vmatpush1.msra.mxu0 0.0
      %538 = vmatprep.subr.mxu0 0.0
      %539 = vmatpush1.msra.mxu0 0.0
      %540 = vmatprep.subr.mxu0 0.0
      %541 = vmatpush1.msra.mxu0 0.0
      %542 = vmatprep.subr.mxu0 0.0
      %543 = vmatpush1.msra.mxu0 0.0
      %544 = vmatprep.subr.mxu0 0.0
      %545 = vmatpush1.msra.mxu0 0.0
      %546 = vmatprep.subr.mxu0 0.0
      %547 = vmatpush1.msra.mxu0 0.0
      %548 = vmatprep.subr.mxu0 0.0
      %549 = vmatpush1.msra.mxu0 0.0
      %550 = vmatprep.subr.mxu0 0.0
      %551 = vmatpush1.msra.mxu0 0.0
      %552 = vmatprep.subr.mxu0 0.0
      %553 = vmatpush1.msra.mxu0 0.0
      %554 = vmatprep.subr.mxu0 0.0
      %555 = vmatpush1.msra.mxu0 0.0
      %556 = vmatprep.subr.mxu0 0.0
      %557 = vmatpush1.msra.mxu0 0.0
      %558 = vmatprep.subr.mxu0 0.0
      %559 = vmatpush1.msra.mxu0 0.0
      %560 = vmatprep.subr.mxu0 0.0
      %561 = vmatpush1.msra.mxu0 0.0
      %562 = vmatprep.subr.mxu0 0.0
      %563 = vmatpush1.msra.mxu0 0.0
      %564 = vmatprep.subr.mxu0 0.0
      %565 = vmatpush1.msra.mxu0 0.0
      %566 = vmatprep.subr.mxu0 0.0
      %567 = vmatpush1.msra.mxu0 0.0
      %568 = vmatprep.subr.mxu0 0.0
      %569 = vmatpush1.msra.mxu0 0.0
      %570 = vmatprep.mubr.f32.mxu0 0.0
      %571 = vmatmul.mubr.f32.gmra.mrb[0].mxu0 %v480
      %v572 = vpop.f32.mrb[0].mxu0
      %v573 = vadd.f32 0.0, %v572
      %v574 = vpop.f32.mrb[0].mxu0
      %575 = vmatprep.mubr.f32.mxu0 0.0
      %576 = vmatmul.mubr.f32.gmra.mrb[0].mxu0 %v483
      %v577 = vpop.f32.mrb[0].mxu0
      %v578 = vadd.f32 0.0, %v577
      %v579 = vpop.f32.mrb[0].mxu0
      %580 = vmatprep.mubr.f32.mxu0 0.0
      %581 = vmatmul.mubr.f32.gmra.mrb[0].mxu0 %v486
      %v582 = vpop.f32.mrb[0].mxu0
      %v583 = vadd.f32 0.0, %v582
      %v584 = vpop.f32.mrb[0].mxu0
      %585 = vmatprep.mubr.f32.mxu0 0.0
      %586 = vmatmul.mubr.f32.gmra.mrb[0].mxu0 %v489
      %v587 = vpop.f32.mrb[0].mxu0
      %v588 = vadd.f32 0.0, %v587
      %v589 = vpop.f32.mrb[0].mxu0
      %590 = vmatprep.mubr.f32.mxu0 0.0
      %591 = vmatmul.mubr.f32.gmra.mrb[0].mxu0 %v492
      %v592 = vpop.f32.mrb[0].mxu0
      %v593 = vadd.f32 0.0, %v592
      %v594 = vpop.f32.mrb[0].mxu0
      %595 = vmatprep.mubr.f32.mxu0 0.0
      %596 = vmatmul.mubr.f32.gmra.mrb[0].mxu0 %v495
      %v597 = vpop.f32.mrb[0].mxu0
      %v598 = vadd.f32 0.0, %v597
      %v599 = vpop.f32.mrb[0].mxu0
      %600 = vmatprep.mubr.f32.mxu0 0.0
      %601 = vmatmul.mubr.f32.gmra.mrb[0].mxu0 %v498
      %v602 = vpop.f32.mrb[0].mxu0
      %v603 = vadd.f32 0.0, %v602
      %v604 = vpop.f32.mrb[0].mxu0
      %605 = vmatprep.mubr.f32.mxu0 0.0
      %606 = vmatmul.mubr.f32.gmra.mrb[0].mxu0 %v501
      %v607 = vpop.f32.mrb[0].mxu0
      %v608 = vadd.f32 0.0, %v607
      %v609 = vpop.f32.mrb[0].mxu0
      %610 = vdwg.mxu0
      %v611 = vld [vmem:[#allocation2] sm:$0xff]
      %v612 = vld [vmem:[#allocation2 + $0x8] sm:$0xff]
      %v613 = vld [vmem:[#allocation2 + $0x10] sm:$0xff]
      %v614 = vld [vmem:[#allocation2 + $0x18] sm:$0xff]
      %v615 = vld [vmem:[#allocation2 + $0x20] sm:$0xff]
      %v616 = vld [vmem:[#allocation2 + $0x28] sm:$0xff]
      %v617 = vld [vmem:[#allocation2 + $0x30] sm:$0xff]
      %v618 = vld [vmem:[#allocation2 + $0x38] sm:$0xff]
      %v619 = vadd.f32 %v611, %v573
      %v620 = vadd.f32 %v612, %v578
      %v621 = vadd.f32 %v613, %v583
      %v622 = vadd.f32 %v614, %v588
      %v623 = vadd.f32 %v615, %v593
      %v624 = vadd.f32 %v616, %v598
      %v625 = vadd.f32 %v617, %v603
      %v626 = vadd.f32 %v618, %v608
      %627 = vst [vmem:[#allocation2] sm:$0xff] %v619
      %628 = vst [vmem:[#allocation2 + $0x8] sm:$0xff] %v620
      %629 = vst [vmem:[#allocation2 + $0x10] sm:$0xff] %v621
      %630 = vst [vmem:[#allocation2 + $0x18] sm:$0xff] %v622
      %631 = vst [vmem:[#allocation2 + $0x20] sm:$0xff] %v623
      %632 = vst [vmem:[#allocation2 + $0x28] sm:$0xff] %v624
      %633 = vst [vmem:[#allocation2 + $0x30] sm:$0xff] %v625
      %634 = vst [vmem:[#allocation2 + $0x38] sm:$0xff] %v626
      %s635 = scalar_lea.vmem %s298, 32
      %v636 = vld [vmem:[%s635] sm:$0xff]
      %v637 = vld [vmem:[%s635 + $0x8] sm:$0xf]
      %v639 = vsel %vm334, %v323, 0
      %v642 = vsel %vm359, %v637, 0
      %644 = vmatprep.subr.mxu0 0.0
      %645 = vmatpush1.msra.mxu0 %v636
      %646 = vmatprep.subr.mxu0 0.0
      %647 = vmatpush1.msra.mxu0 %v642
      %648 = vmatprep.subr.mxu0 0.0
      %649 = vmatpush1.msra.mxu0 0.0
      %650 = vmatprep.subr.mxu0 0.0
      %651 = vmatpush1.msra.mxu0 0.0
      %652 = vmatprep.subr.mxu0 0.0
      %653 = vmatpush1.msra.mxu0 0.0
      %654 = vmatprep.subr.mxu0 0.0
      %655 = vmatpush1.msra.mxu0 0.0
      %656 = vmatprep.subr.mxu0 0.0
      %657 = vmatpush1.msra.mxu0 0.0
      %658 = vmatprep.subr.mxu0 0.0
      %659 = vmatpush1.msra.mxu0 0.0
      %660 = vmatprep.subr.mxu0 0.0
      %661 = vmatpush1.msra.mxu0 0.0
      %662 = vmatprep.subr.mxu0 0.0
      %663 = vmatpush1.msra.mxu0 0.0
      %664 = vmatprep.subr.mxu0 0.0
      %665 = vmatpush1.msra.mxu0 0.0
      %666 = vmatprep.subr.mxu0 0.0
      %667 = vmatpush1.msra.mxu0 0.0
      %668 = vmatprep.subr.mxu0 0.0
      %669 = vmatpush1.msra.mxu0 0.0
      %670 = vmatprep.subr.mxu0 0.0
      %671 = vmatpush1.msra.mxu0 0.0
      %672 = vmatprep.subr.mxu0 0.0
      %673 = vmatpush1.msra.mxu0 0.0
      %674 = vmatprep.subr.mxu0 0.0
      %675 = vmatpush1.msra.mxu0 0.0
      %676 = vmatprep.subr.mxu0 0.0
      %677 = vmatpush1.msra.mxu0 0.0
      %678 = vmatprep.subr.mxu0 0.0
      %679 = vmatpush1.msra.mxu0 0.0
      %680 = vmatprep.subr.mxu0 0.0
      %681 = vmatpush1.msra.mxu0 0.0
      %682 = vmatprep.subr.mxu0 0.0
      %683 = vmatpush1.msra.mxu0 0.0
      %684 = vmatprep.subr.mxu0 0.0
      %685 = vmatpush1.msra.mxu0 0.0
      %686 = vmatprep.subr.mxu0 0.0
      %687 = vmatpush1.msra.mxu0 0.0
      %688 = vmatprep.subr.mxu0 0.0
      %689 = vmatpush1.msra.mxu0 0.0
      %690 = vmatprep.subr.mxu0 0.0
      %691 = vmatpush1.msra.mxu0 0.0
      %692 = vmatprep.subr.mxu0 0.0
      %693 = vmatpush1.msra.mxu0 0.0
      %694 = vmatprep.subr.mxu0 0.0
      %695 = vmatpush1.msra.mxu0 0.0
      %696 = vmatprep.subr.mxu0 0.0
      %697 = vmatpush1.msra.mxu0 0.0
      %698 = vmatprep.subr.mxu0 0.0
      %699 = vmatpush1.msra.mxu0 0.0
      %700 = vmatprep.subr.mxu0 0.0
      %701 = vmatpush1.msra.mxu0 0.0
      %702 = vmatprep.subr.mxu0 0.0
      %703 = vmatpush1.msra.mxu0 0.0
      %704 = vmatprep.subr.mxu0 0.0
      %705 = vmatpush1.msra.mxu0 0.0
      %706 = vmatprep.subr.mxu0 0.0
      %707 = vmatpush1.msra.mxu0 0.0
      %708 = vmatprep.mubr.f32.mxu0 0.0
      %709 = vmatmul.mubr.f32.gmra.mrb[0].mxu0 %v339
      %v710 = vpop.f32.mrb[0].mxu0
      %v711 = vadd.f32 0.0, %v710
      %v712 = vpop.f32.mrb[0].mxu0
      %713 = vmatprep.mubr.f32.mxu0 0.0
      %714 = vmatmul.mubr.f32.gmra.mrb[0].mxu0 %v342
      %v715 = vpop.f32.mrb[0].mxu0
      %v716 = vadd.f32 0.0, %v715
      %v717 = vpop.f32.mrb[0].mxu0
      %718 = vmatprep.mubr.f32.mxu0 0.0
      %719 = vmatmul.mubr.f32.gmra.mrb[0].mxu0 %v345
      %v720 = vpop.f32.mrb[0].mxu0
      %v721 = vadd.f32 0.0, %v720
      %v722 = vpop.f32.mrb[0].mxu0
      %723 = vmatprep.mubr.f32.mxu0 0.0
      %724 = vmatmul.mubr.f32.gmra.mrb[0].mxu0 %v348
      %v725 = vpop.f32.mrb[0].mxu0
      %v726 = vadd.f32 0.0, %v725
      %v727 = vpop.f32.mrb[0].mxu0
      %728 = vmatprep.mubr.f32.mxu0 0.0
      %729 = vmatmul.mubr.f32.gmra.mrb[0].mxu0 %v351
      %v730 = vpop.f32.mrb[0].mxu0
      %v731 = vadd.f32 0.0, %v730
      %v732 = vpop.f32.mrb[0].mxu0
      %733 = vmatprep.mubr.f32.mxu0 0.0
      %734 = vmatmul.mubr.f32.gmra.mrb[0].mxu0 %v354
      %v735 = vpop.f32.mrb[0].mxu0
      %v736 = vadd.f32 0.0, %v735
      %v737 = vpop.f32.mrb[0].mxu0
      %738 = vmatprep.mubr.f32.mxu0 0.0
      %739 = vmatmul.mubr.f32.gmra.mrb[0].mxu0 %v357
      %v740 = vpop.f32.mrb[0].mxu0
      %v741 = vadd.f32 0.0, %v740
      %v742 = vpop.f32.mrb[0].mxu0
      %743 = vmatprep.mubr.f32.mxu0 0.0
      %744 = vmatmul.mubr.f32.gmra.mrb[0].mxu0 %v639
      %v745 = vpop.f32.mrb[0].mxu0
      %v746 = vadd.f32 0.0, %v745
      %v747 = vpop.f32.mrb[0].mxu0
      %748 = vdwg.mxu0
      %v749 = vld [vmem:[#allocation2] sm:$0xff]
      %v750 = vld [vmem:[#allocation2 + $0x8] sm:$0xff]
      %v751 = vld [vmem:[#allocation2 + $0x10] sm:$0xff]
      %v752 = vld [vmem:[#allocation2 + $0x18] sm:$0xff]
      %v753 = vld [vmem:[#allocation2 + $0x20] sm:$0xff]
      %v754 = vld [vmem:[#allocation2 + $0x28] sm:$0xff]
      %v755 = vld [vmem:[#allocation2 + $0x30] sm:$0xff]
      %v756 = vld [vmem:[#allocation2 + $0x38] sm:$0xff]
      %v757 = vadd.f32 %v749, %v711
      %v758 = vadd.f32 %v750, %v716
      %v759 = vadd.f32 %v751, %v721
      %v760 = vadd.f32 %v752, %v726
      %v761 = vadd.f32 %v753, %v731
      %v762 = vadd.f32 %v754, %v736
      %v763 = vadd.f32 %v755, %v741
      %v764 = vadd.f32 %v756, %v746
      %765 = vst [vmem:[#allocation2] sm:$0xff] %v757
      %766 = vst [vmem:[#allocation2 + $0x8] sm:$0xff] %v758
      %767 = vst [vmem:[#allocation2 + $0x10] sm:$0xff] %v759
      %768 = vst [vmem:[#allocation2 + $0x18] sm:$0xff] %v760
      %769 = vst [vmem:[#allocation2 + $0x20] sm:$0xff] %v761
      %770 = vst [vmem:[#allocation2 + $0x28] sm:$0xff] %v762
      %771 = vst [vmem:[#allocation2 + $0x30] sm:$0xff] %v763
      %772 = vst [vmem:[#allocation2 + $0x38] sm:$0xff] %v764
      %v773 = vld [vmem:[#allocation2] sm:$0xff]
      %v774 = vld [vmem:[#allocation2 + $0x8] sm:$0xff]
      %v775 = vld [vmem:[#allocation2 + $0x10] sm:$0xff]
      %v776 = vld [vmem:[#allocation2 + $0x18] sm:$0xff]
      %v777 = vld [vmem:[#allocation2 + $0x20] sm:$0xff]
      %v778 = vld [vmem:[#allocation2 + $0x28] sm:$0xff]
      %v779 = vld [vmem:[#allocation2 + $0x30] sm:$0xff]
      %v780 = vld [vmem:[#allocation2 + $0x38] sm:$0xff]
      %v781 = vld [vmem:[%s301] sm:$0x1]
      %v783 = vlaneseq
      %v784 = vshrl.u32 %v783, 7
      %v785 = vsub.s32 0, %v784
      %v786 = vrot.slane %v781, %v785
      %v788 = vadd.f32 %v773, %v786
      %v789 = vadd.f32 %v774, %v786
      %v790 = vadd.f32 %v775, %v786
      %v791 = vadd.f32 %v776, %v786
      %v792 = vadd.f32 %v777, %v786
      %v793 = vadd.f32 %v778, %v786
      %v794 = vadd.f32 %v779, %v786
      %v795 = vadd.f32 %v780, %v786
      %796 = vst [vmem:[%s313] sm:$0xff] %v788
      %797 = vst [vmem:[%s313 + $0x8] sm:$0xff] %v789
      %798 = vst [vmem:[%s313 + $0x10] sm:$0xff] %v790
      %799 = vst [vmem:[%s313 + $0x18] sm:$0xff] %v791
      %800 = vst [vmem:[%s313 + $0x20] sm:$0xff] %v792
      %801 = vst [vmem:[%s313 + $0x28] sm:$0xff] %v793
      %802 = vst [vmem:[%s313 + $0x30] sm:$0xff] %v794
      %803 = vst [vmem:[%s313 + $0x38] sm:$0xff] %v795
      %s804 = smul.u32 8, %s22
      %p805 = scmp.lt.s32.totalorder %s21, 1
      %s806 = scalar_select %p805, %s21, 1
      %p807 = scmp.lt.s32.totalorder %s804, 7
      %s808 = scalar_select %p807, %s804, 7
      %p809 = scmp.lt.s32.totalorder %s20, 0
      %s810 = scalar_select %p809, %s20, 0
      %s811 = sadd.s32 %s810, %s808
      %s812 = smul.addr %s806, 8
      %s813 = sadd.s32 %s811, %s812
      %s814 = smul.addr %s813, 8
      %s815 = scalar_lea.vmem %s4, %s814
      // Predicated region
      $region37: #{downsample_forward.1} parent=35 // pred_check
        %p816 = pneg %p164
      $region38: #{downsample_forward.1} parent=35 // pred_check_branch
        %818 = sbr.rel (%p816) target = $region40
      $region39: #{downsample_forward.1} parent=35 // pred_region
        %s819 = smul.u32 8, %s22
      $region40: #{downsample_forward.1} parent=35 // pred_fallthru
        _
    $region36: #{downsample_forward.1} parent=5 // pred_fallthru
      _
    %p820 = scmp.le.s32.totalorder 2, %s10
    // Predicated region
    $region41: #{downsample_forward.1} parent=5 // pred_check
      %p821 = pneg %p820
    $region42: #{downsample_forward.1} parent=5 // pred_check_branch
      %823 = sbr.rel (%p821) target = $region44
    $region43: #{downsample_forward.1} parent=5 // pred_region
      %s824 = ssub.s32 %s10, 2
      // Predicated region
      $region45: #{downsample_forward.1} parent=43 // pred_check
        %p825 = pneg %p170
      $region46: #{downsample_forward.1} parent=43 // pred_check_branch
        %827 = sbr.rel (%p825) target = $region48
      $region47: #{downsample_forward.1} parent=43 // pred_region
        %s828 = smul.u32 8, %s25
        %p829 = scmp.lt.s32.totalorder %s24, 1
        %s830 = scalar_select %p829, %s24, 1
        %p831 = scmp.lt.s32.totalorder %s828, 7
        %s832 = scalar_select %p831, %s828, 7
        %p833 = scmp.lt.s32.totalorder %s23, 0
        %s834 = scalar_select %p833, %s23, 0
        %s835 = sadd.s32 %s834, %s832
        %s836 = smul.addr %s830, 8
        %s837 = sadd.s32 %s835, %s836
        %s838 = smul.addr %s837, 8
        %s839 = scalar_lea.vmem %s4, %s838
      $region48: #{downsample_forward.1} parent=43 // pred_fallthru
        _
    $region44: #{downsample_forward.1} parent=5 // pred_fallthru
      _
  $region6: #{downsample_forward.1} parent=0 // loop_footer
    %s14 = sadd.s32 1, %s10
  $region7: #{downsample_forward.1} parent=0 // loop_footer_branch
    %9 = sbr.rel target = $region3
  $region8: #{downsample_forward.1} parent=0 // loop_exit
    _

</llo_original>
